<compile_context>
chip_gen: v7x
topology: tpu7x:2x2x1
jax: 0.10.0
libtpu: 0.0.40
codegen_flags: <defaults>
</compile_context>

<pallas_src>
import jax
import jax.numpy as jnp
from jax.experimental import pallas as pl
from jax.experimental.pallas import tpu as pltpu

N_EMBED = 32
HIDDEN = 4 * N_EMBED   # 128
BLOCK_SIZE = 8         # T
BATCH = 2              # B

_INNER_CHUNK = 1024    # rows per inner compute sub-block (caps h at ~0.5 MiB f32)


def _make_ff_kernel(tile_rows):
    """Build a kernel over one (tile_rows, E) token block with inner row chunking."""
    if tile_rows > _INNER_CHUNK and tile_rows % _INNER_CHUNK == 0:
        chunk = _INNER_CHUNK
    else:
        chunk = tile_rows

    def kernel(x_ref, w1_ref, b1_ref, w2_ref, b2_ref, o_ref):
        # x_ref:  (tile_rows, E) f32    w1_ref: (E, H) bf16    b1_ref: (1, H) f32
        # w2_ref: (H, E) bf16           b2_ref: (1, E) f32     o_ref: (tile_rows, E)
        w1 = w1_ref[...]
        b1 = b1_ref[...]
        w2 = w2_ref[...]
        b2 = b2_ref[...]

        def compute(row_start):
            x = x_ref[pl.ds(row_start, chunk), :].astype(jnp.bfloat16)  # in-kernel cast
            h = jnp.dot(x, w1, preferred_element_type=jnp.float32)      # (chunk, H) f32
            h = jnp.maximum(h + b1, 0.0).astype(jnp.bfloat16)           # bias + ReLU
            out = jnp.dot(h, w2, preferred_element_type=jnp.float32)    # (chunk, E) f32
            out = out + b2
            # Dropout in eval mode is the identity.
            o_ref[pl.ds(row_start, chunk), :] = out.astype(o_ref.dtype)

        if chunk == tile_rows:
            compute(0)
        else:
            def body(c, carry):
                compute(pl.multiple_of(c * chunk, chunk))
                return carry
            jax.lax.fori_loop(0, tile_rows // chunk, body, 0, unroll=False)

    return kernel


def feedforward(x, w1, b1, w2, b2, *, m_tile=8192, out_dtype=jnp.float32):
    """x: (..., nEmbed) f32 -> (..., nEmbed) out_dtype.

    w1: (nEmbed, 4*nEmbed)   b1: (1, 4*nEmbed)
    w2: (4*nEmbed, nEmbed)   b2: (1, nEmbed)    (w2 in matmul-native (in, out) layout)

    Numerics: matmul inputs are rounded to bf16 (f32 accumulation), so results differ
    from a pure-f32 PyTorch forward at the ~1e-2 level.
    out_dtype=jnp.bfloat16 halves the dominant HBM write stream if the consumer
    tolerates it; default f32 matches the PyTorch module.
    """
    if m_tile % 8 != 0:
        raise ValueError(f"m_tile must be a multiple of 8, got {m_tile}")
    *lead, E = x.shape
    H = w1.shape[1]
    M = 1
    for d in lead:
        M *= d
    x2d = x.reshape(M, E)

    # Single block when it fits (block == full array dim is always layout-legal);
    # otherwise stream m_tile-row blocks and let Pallas mask the edge block.
    tile = M if M <= m_tile else m_tile
    grid = (pl.cdiv(M, tile),)

    w1_bf = w1.astype(jnp.bfloat16)   # ~16 KiB total: negligible one-off casts
    w2_bf = w2.astype(jnp.bfloat16)

    out2d = pl.pallas_call(
        _make_ff_kernel(tile),
        out_shape=jax.ShapeDtypeStruct((M, E), out_dtype),
        grid_spec=pltpu.PrefetchScalarGridSpec(
            num_scalar_prefetch=0,
            grid=grid,
            in_specs=[
                pl.BlockSpec((tile, E), lambda i: (i, 0)),   # streamed f32 x tiles
                pl.BlockSpec((E, H), lambda i: (0, 0)),      # resident w1 (bf16)
                pl.BlockSpec((1, H), lambda i: (0, 0)),      # resident b1 (f32)
                pl.BlockSpec((H, E), lambda i: (0, 0)),      # resident w2 (bf16)
                pl.BlockSpec((1, E), lambda i: (0, 0)),      # resident b2 (f32)
            ],
            out_specs=pl.BlockSpec((tile, E), lambda i: (i, 0)),  # token-major out
        ),
        compiler_params=pltpu.CompilerParams(
            dimension_semantics=("parallel",),   # independent token tiles
        ),
    )(x2d, w1_bf, b1, w2_bf, b2)

    return out2d.reshape(*lead, E)


def init_params(key):
    """Deterministic init matching PyTorch Linear shapes (w2 stored as (in, out))."""
    k1, k2, k3, k4 = jax.random.split(key, 4)
    bound1 = 1.0 / (N_EMBED ** 0.5)
    w1 = jax.random.uniform(k1, (N_EMBED, HIDDEN), jnp.float32, -bound1, bound1)
    b1 = jax.random.uniform(k2, (1, HIDDEN), jnp.float32, -bound1, bound1)
    bound2 = 1.0 / (HIDDEN ** 0.5)
    w2 = jax.random.uniform(k3, (HIDDEN, N_EMBED), jnp.float32, -bound2, bound2)
    b2 = jax.random.uniform(k4, (1, N_EMBED), jnp.float32, -bound2, bound2)
    return w1, b1, w2, b2


def reference(x, w1, b1, w2, b2):
    """Plain-JAX reference mimicking the kernel's bf16 rounding of matmul inputs."""
    *lead, E = x.shape
    x2 = x.reshape(-1, E).astype(jnp.bfloat16).astype(jnp.float32)
    w1f = w1.astype(jnp.bfloat16).astype(jnp.float32)
    w2f = w2.astype(jnp.bfloat16).astype(jnp.float32)
    h = jnp.maximum(x2 @ w1f + b1, 0.0)
    h = h.astype(jnp.bfloat16).astype(jnp.float32)
    out = h @ w2f + b2
    return out.reshape(*lead, E)


if __name__ == "__main__":
    key = jax.random.PRNGKey(0)
    kx, kp = jax.random.split(key)

    # Small shapes implied by the module: B=2, T=blockSize=8, E=nEmbed=32.
    x = jax.random.normal(kx, (BATCH, BLOCK_SIZE, N_EMBED), jnp.float32)
    w1, b1, w2, b2 = init_params(kp)

    out = jax.block_until_ready(feedforward(x, w1, b1, w2, b2))
    ref = reference(x, w1, b1, w2, b2)
    assert out.shape == (BATCH, BLOCK_SIZE, N_EMBED)
    assert jnp.allclose(out, ref, atol=1e-2, rtol=1e-2)

    # Gridded path with a non-divisible edge block (no pad/slice in the wrapper).
    xl = jax.random.normal(jax.random.PRNGKey(1), (4, 600, N_EMBED), jnp.float32)
    refl = reference(xl, w1, b1, w2, b2)
    out_grid = jax.block_until_ready(feedforward(xl, w1, b1, w2, b2, m_tile=1024))
    assert out_grid.shape == xl.shape
    assert jnp.allclose(out_grid, refl, atol=1e-2, rtol=1e-2)

    # Gridded path that also exercises the inner fori_loop chunking (tile > 1024).
    out_chunk = jax.block_until_ready(feedforward(xl, w1, b1, w2, b2, m_tile=2048))
    assert jnp.allclose(out_chunk, refl, atol=1e-2, rtol=1e-2)

    print("KERNEL_OK")
</pallas_src>

<mosaic_0001>
module attributes {stable_mosaic.version = 11 : i64} {
  func.func @kernel(%arg0: i32, %arg1: memref<16x32xf32, #tpu.memory_space<vmem>>, %arg2: memref<32x128xbf16, #tpu.memory_space<vmem>>, %arg3: memref<1x128xf32, #tpu.memory_space<vmem>>, %arg4: memref<128x32xbf16, #tpu.memory_space<vmem>>, %arg5: memref<1x32xf32, #tpu.memory_space<vmem>>, %arg6: memref<16x32xf32, #tpu.memory_space<vmem>>) attributes {dimension_semantics = [#tpu.dimension_semantics<parallel>], iteration_bounds = array<i64: 1>, scalar_prefetch = 0 : i64, scratch_operands = 0 : i64, tpu.core_type = #tpu.core_type<tc>, window_params = [{transform_indices = @transform_0, window_bounds = array<i64: 16, 32>}, {pipeline_mode = #tpu.pipeline_mode<synchronous>, transform_indices = @transform_1, window_bounds = array<i64: 32, 128>}, {pipeline_mode = #tpu.pipeline_mode<synchronous>, transform_indices = @transform_2, window_bounds = array<i64: 1, 128>}, {pipeline_mode = #tpu.pipeline_mode<synchronous>, transform_indices = @transform_3, window_bounds = array<i64: 128, 32>}, {pipeline_mode = #tpu.pipeline_mode<synchronous>, transform_indices = @transform_4, window_bounds = array<i64: 1, 32>}, {transform_indices = @transform_5, window_bounds = array<i64: 16, 32>}]} {
    %c0 = arith.constant 0 : index
    %c0_0 = arith.constant 0 : index
    %0 = vector.load %arg2[%c0, %c0_0] : memref<32x128xbf16, #tpu.memory_space<vmem>>, vector<32x128xbf16>
    %c0_1 = arith.constant 0 : index
    %c0_2 = arith.constant 0 : index
    %1 = vector.load %arg3[%c0_1, %c0_2] : memref<1x128xf32, #tpu.memory_space<vmem>>, vector<1x128xf32>
    %c0_3 = arith.constant 0 : index
    %c0_4 = arith.constant 0 : index
    %2 = vector.load %arg4[%c0_3, %c0_4] : memref<128x32xbf16, #tpu.memory_space<vmem>>, vector<128x32xbf16>
    %c0_5 = arith.constant 0 : index
    %c0_6 = arith.constant 0 : index
    %3 = vector.load %arg5[%c0_5, %c0_6] : memref<1x32xf32, #tpu.memory_space<vmem>>, vector<1x32xf32>
    %c0_7 = arith.constant 0 : index
    %c0_8 = arith.constant 0 : index
    %4 = vector.load %arg1[%c0_7, %c0_8] : memref<16x32xf32, #tpu.memory_space<vmem>>, vector<16x32xf32>
    %5 = arith.truncf %4 : vector<16x32xf32> to vector<16x32xbf16>
    %cst = arith.constant dense<0.000000e+00> : vector<16x128xf32>
    %6 = tpu.matmul %5, %0, %cst {dimension_numbers = #tpu.dot_dimension_numbers<[1], [0], [0], [1], [0, 0, 1, 1], [], []>} : vector<16x32xbf16>, vector<32x128xbf16>, vector<16x128xf32> -> vector<16x128xf32>
    %7 = vector.broadcast %1 : vector<1x128xf32> to vector<16x128xf32>
    %8 = arith.addf %6, %7 : vector<16x128xf32>
    %cst_9 = arith.constant 0.000000e+00 : f32
    %9 = vector.broadcast %cst_9 : f32 to vector<16x128xf32>
    %10 = arith.maximumf %8, %9 : vector<16x128xf32>
    %11 = arith.truncf %10 : vector<16x128xf32> to vector<16x128xbf16>
    %cst_10 = arith.constant dense<0.000000e+00> : vector<16x32xf32>
    %12 = tpu.matmul %11, %2, %cst_10 {dimension_numbers = #tpu.dot_dimension_numbers<[1], [0], [0], [1], [0, 0, 1, 1], [], []>} : vector<16x128xbf16>, vector<128x32xbf16>, vector<16x32xf32> -> vector<16x32xf32>
    %13 = vector.broadcast %3 : vector<1x32xf32> to vector<16x32xf32>
    %14 = arith.addf %12, %13 : vector<16x32xf32>
    %c0_11 = arith.constant 0 : index
    %c0_12 = arith.constant 0 : index
    %15 = vector.load %arg6[%c0_11, %c0_12] : memref<16x32xf32, #tpu.memory_space<vmem>>, vector<16x32xf32>
    tpu.vector_store %arg6[%c0_11, %c0_12], %14 {strides = array<i32>} : memref<16x32xf32, #tpu.memory_space<vmem>>, vector<16x32xf32>,
    return
  }
  func.func @transform_0(%arg0: i32) -> (i32, i32) {
    %c0_i32 = arith.constant 0 : i32
    %c0_i32_0 = arith.constant 0 : i32
    return %arg0, %c0_i32 : i32, i32
  }
  func.func @transform_1(%arg0: i32) -> (i32, i32) {
    %c0_i32 = arith.constant 0 : i32
    %c0_i32_0 = arith.constant 0 : i32
    %c0_i32_1 = arith.constant 0 : i32
    return %c0_i32, %c0_i32_0 : i32, i32
  }
  func.func @transform_2(%arg0: i32) -> (i32, i32) {
    %c0_i32 = arith.constant 0 : i32
    %c0_i32_0 = arith.constant 0 : i32
    %c0_i32_1 = arith.constant 0 : i32
    return %c0_i32, %c0_i32_0 : i32, i32
  }
  func.func @transform_3(%arg0: i32) -> (i32, i32) {
    %c0_i32 = arith.constant 0 : i32
    %c0_i32_0 = arith.constant 0 : i32
    %c0_i32_1 = arith.constant 0 : i32
    return %c0_i32, %c0_i32_0 : i32, i32
  }
  func.func @transform_4(%arg0: i32) -> (i32, i32) {
    %c0_i32 = arith.constant 0 : i32
    %c0_i32_0 = arith.constant 0 : i32
    %c0_i32_1 = arith.constant 0 : i32
    return %c0_i32, %c0_i32_0 : i32, i32
  }
  func.func @transform_5(%arg0: i32) -> (i32, i32) {
    %c0_i32 = arith.constant 0 : i32
    %c0_i32_0 = arith.constant 0 : i32
    return %arg0, %c0_i32 : i32, i32
  }
}

</mosaic_0001>

<llo_original>
// kernel: tpu_custom_call.1
$region0: #{tpu_custom_call.1}
  #allocation0 [shape = 'u32[]', space=smem, size = 0x4, offset = 0x4, fixed_abs, tag = 'smem constant byte address 0x4 - core index']
  #allocation1 [shape = 'u32[144,128]{1,0:T(1,128)}', space=vmem, size = 0x12000, scoped, tag = 'internal scratch']
  %s0 = inlined_call_operand.vmem [shape: f32[16,32], index: 0, kind: input, shape index: {}]
  %s1 = inlined_call_operand.vmem [shape: bf16[32,128], index: 1, kind: input, shape index: {}]
  %s2 = inlined_call_operand.vmem [shape: f32[1,128], index: 2, kind: input, shape index: {}]
  %s3 = inlined_call_operand.vmem [shape: bf16[128,32], index: 3, kind: input, shape index: {}]
  %s4 = inlined_call_operand.vmem [shape: f32[1,32], index: 4, kind: input, shape index: {}]
  %s5 = inlined_call_operand.hbm [shape: f32[16,32], index: 5, kind: output, shape index: {}]
  %s6 = sld [smem:[#allocation0]]
  $region30: #{tpu_custom_call.1} parent=0
    _
  %s8 = ssub.s32 1, %s6
  %s9 = scalar_select 0, %s8, %s6
  $region1: #{tpu_custom_call.1} parent=0
    #allocation2 [shape = 'u8[8192]{0}', space=vmem, size = 0x2000, scoped, tag = 'output window, operand 0, single buffered']
    #allocation3 [shape = 's32[1]{0}', space=sflag, size = 0x4, scoped, tag = 'scoped memory for tpu_custom_call.1']
    %10 = vsyncpa [#allocation3], 0
    // Predicated region
    $region2: #{tpu_custom_call.1} parent=1 // pred_check
      _
    $region3: #{tpu_custom_call.1} parent=1 // pred_check_branch
      %12 = sbr.rel (0) target = $region5
    $region4: #{tpu_custom_call.1} parent=1 // pred_region
      _
    $region5: #{tpu_custom_call.1} parent=1 // pred_fallthru
      _
    // Predicated region
    $region6: #{tpu_custom_call.1} parent=1 // pred_check
      _
    $region7: #{tpu_custom_call.1} parent=1 // pred_check_branch
      %14 = sbr.rel (0) target = $region9
    $region8: #{tpu_custom_call.1} parent=1 // pred_region
      _
    $region9: #{tpu_custom_call.1} parent=1 // pred_fallthru
      _
    // Predicated region
    $region10: #{tpu_custom_call.1} parent=1 // pred_check
      _
    $region11: #{tpu_custom_call.1} parent=1 // pred_check_branch
      %16 = sbr.rel (0) target = $region13
    $region12: #{tpu_custom_call.1} parent=1 // pred_region
      _
    $region13: #{tpu_custom_call.1} parent=1 // pred_fallthru
      _
    // Predicated region
    $region14: #{tpu_custom_call.1} parent=1 // pred_check
      _
    $region15: #{tpu_custom_call.1} parent=1 // pred_check_branch
      %18 = sbr.rel (0) target = $region17
    $region16: #{tpu_custom_call.1} parent=1 // pred_region
      _
    $region17: #{tpu_custom_call.1} parent=1 // pred_fallthru
      _
    // Predicated region
    $region18: #{tpu_custom_call.1} parent=1 // pred_check
      _
    $region19: #{tpu_custom_call.1} parent=1 // pred_check_branch
      %20 = sbr.rel (0) target = $region21
    $region20: #{tpu_custom_call.1} parent=1 // pred_region
      _
    $region21: #{tpu_custom_call.1} parent=1 // pred_fallthru
      _
    %v22 = vld [vmem:[%s1] sm:$0xf]
    %v23 = vld [vmem:[%s1 + $0x4] sm:$0xf]
    %v24 = vld [vmem:[%s1 + $0x8] sm:$0xf]
    %v25 = vld [vmem:[%s1 + $0xc] sm:$0xf]
    %v26 = vld [vmem:[%s2] sm:$0x1]
    %v27 = vld [vmem:[%s3] sm:$0xf]
    %v28 = vld [vmem:[%s3 + $0x4] sm:$0xf]
    %v29 = vld [vmem:[%s3 + $0x8] sm:$0xf]
    %v30 = vld [vmem:[%s3 + $0xc] sm:$0xf]
    %v31 = vld [vmem:[%s3 + $0x10] sm:$0xf]
    %v32 = vld [vmem:[%s3 + $0x14] sm:$0xf]
    %v33 = vld [vmem:[%s3 + $0x18] sm:$0xf]
    %v34 = vld [vmem:[%s3 + $0x1c] sm:$0xf]
    %v35 = vld [vmem:[%s3 + $0x20] sm:$0xf]
    %v36 = vld [vmem:[%s3 + $0x24] sm:$0xf]
    %v37 = vld [vmem:[%s3 + $0x28] sm:$0xf]
    %v38 = vld [vmem:[%s3 + $0x2c] sm:$0xf]
    %v39 = vld [vmem:[%s3 + $0x30] sm:$0xf]
    %v40 = vld [vmem:[%s3 + $0x34] sm:$0xf]
    %v41 = vld [vmem:[%s3 + $0x38] sm:$0xf]
    %v42 = vld [vmem:[%s3 + $0x3c] sm:$0xf]
    %v43 = vld [vmem:[%s4] sm:$0x1]
    %v44 = vld [vmem:[%s0] sm:$0xff]
    %v45 = vld [vmem:[%s0 + $0x8] sm:$0xff]
    %v46 = vpack.c.bf16 %v45, %v44
    %v48 = vlaneseq
    %v49 = vshrl.u32 %v48, 7
    %v50 = vsub.s32 0, %v49
    %v51 = vrot.slane %v26, %v50
    %v57 = vunpack.c.l.b16 %v22
    %v58 = vunpack.c.l.b16 %v23
    %v59 = vunpack.c.l.b16 %v24
    %v60 = vunpack.c.l.b16 %v25
    %v61 = vpack.c.b16 %v58, %v57
    %v62 = vpack.c.b16 %v60, %v59
    %vm65 = vcmask 261120
    %v67 = vsel %vm65, %v46, 0
    %69 = vmatprep.subr.bf16.mxu0 0
    %70 = vmatpush1.bf16.msra.mxu0 %v61
    %71 = vmatprep.subr.bf16.mxu0 0
    %72 = vmatpush1.bf16.msra.mxu0 %v62
    %73 = vmatprep.subr.bf16.mxu0 0
    %74 = vmatpush1.bf16.msra.mxu0 0
    %75 = vmatprep.subr.bf16.mxu0 0
    %76 = vmatpush1.bf16.msra.mxu0 0
    %77 = vmatprep.subr.bf16.mxu0 0
    %78 = vmatpush1.bf16.msra.mxu0 0
    %79 = vmatprep.subr.bf16.mxu0 0
    %80 = vmatpush1.bf16.msra.mxu0 0
    %81 = vmatprep.subr.bf16.mxu0 0
    %82 = vmatpush1.bf16.msra.mxu0 0
    %83 = vmatprep.subr.bf16.mxu0 0
    %84 = vmatpush1.bf16.msra.mxu0 0
    %85 = vmatprep.subr.bf16.mxu0 0
    %86 = vmatpush1.bf16.msra.mxu0 0
    %87 = vmatprep.subr.bf16.mxu0 0
    %88 = vmatpush1.bf16.msra.mxu0 0
    %89 = vmatprep.subr.bf16.mxu0 0
    %90 = vmatpush1.bf16.msra.mxu0 0
    %91 = vmatprep.subr.bf16.mxu0 0
    %92 = vmatpush1.bf16.msra.mxu0 0
    %93 = vmatprep.subr.bf16.mxu0 0
    %94 = vmatpush1.bf16.msra.mxu0 0
    %95 = vmatprep.subr.bf16.mxu0 0
    %96 = vmatpush1.bf16.msra.mxu0 0
    %97 = vmatprep.subr.bf16.mxu0 0
    %98 = vmatpush1.bf16.msra.mxu0 0
    %99 = vmatprep.subr.bf16.mxu0 0
    %100 = vmatpush1.bf16.msra.mxu0 0
    %101 = vmatprep.mubr.bf16.mxu0 0
    %102 = vmatmul.mubr.bf16.gmra.mrb[0].mxu0 %v67
    %v103 = vpop.f32.mrb[0].mxu0
    %v104 = vadd.f32 %v51, %v103
    %v105 = vpop.f32.mrb[0].mxu0
    %v106 = vpop.f32.mrb[0].mxu0
    %v107 = vadd.f32 %v51, %v106
    %v108 = vpop.f32.mrb[0].mxu0
    %109 = vdwg.mxu0
    %v110 = vmax.f32 %v104, 0.0
    %v111 = vmax.f32 %v107, 0.0
    %v112 = vpack.c.bf16 %v111, %v110
    %v114 = vlaneseq
    %v115 = vshrl.u32 %v114, 7
    %v116 = vsub.s32 0, %v115
    %v117 = vrot.slane %v43, %v116
    %v135 = vunpack.c.l.b16 %v27
    %v136 = vunpack.c.l.b16 %v28
    %v137 = vunpack.c.l.b16 %v29
    %v138 = vunpack.c.l.b16 %v30
    %v139 = vunpack.c.l.b16 %v31
    %v140 = vunpack.c.l.b16 %v32
    %v141 = vunpack.c.l.b16 %v33
    %v142 = vunpack.c.l.b16 %v34
    %v143 = vunpack.c.l.b16 %v35
    %v144 = vunpack.c.l.b16 %v36
    %v145 = vunpack.c.l.b16 %v37
    %v146 = vunpack.c.l.b16 %v38
    %v147 = vunpack.c.l.b16 %v39
    %v148 = vunpack.c.l.b16 %v40
    %v149 = vunpack.c.l.b16 %v41
    %v150 = vunpack.c.l.b16 %v42
    %v151 = vpack.c.b16 %v136, %v135
    %v152 = vpack.c.b16 %v138, %v137
    %v153 = vpack.c.b16 %v140, %v139
    %v154 = vpack.c.b16 %v142, %v141
    %v155 = vpack.c.b16 %v144, %v143
    %v156 = vpack.c.b16 %v146, %v145
    %v157 = vpack.c.b16 %v148, %v147
    %v158 = vpack.c.b16 %v150, %v149
    %167 = vmatprep.subr.bf16.mxu0 0
    %168 = vmatpush1.bf16.msra.mxu0 %v151
    %169 = vmatprep.subr.bf16.mxu0 0
    %170 = vmatpush1.bf16.msra.mxu0 %v152
    %171 = vmatprep.subr.bf16.mxu0 0
    %172 = vmatpush1.bf16.msra.mxu0 %v153
    %173 = vmatprep.subr.bf16.mxu0 0
    %174 = vmatpush1.bf16.msra.mxu0 %v154
    %175 = vmatprep.subr.bf16.mxu0 0
    %176 = vmatpush1.bf16.msra.mxu0 %v155
    %177 = vmatprep.subr.bf16.mxu0 0
    %178 = vmatpush1.bf16.msra.mxu0 %v156
    %179 = vmatprep.subr.bf16.mxu0 0
    %180 = vmatpush1.bf16.msra.mxu0 %v157
    %181 = vmatprep.subr.bf16.mxu0 0
    %182 = vmatpush1.bf16.msra.mxu0 %v158
    %183 = vmatprep.subr.bf16.mxu0 0
    %184 = vmatpush1.bf16.msra.mxu0 0
    %185 = vmatprep.subr.bf16.mxu0 0
    %186 = vmatpush1.bf16.msra.mxu0 0
    %187 = vmatprep.subr.bf16.mxu0 0
    %188 = vmatpush1.bf16.msra.mxu0 0
    %189 = vmatprep.subr.bf16.mxu0 0
    %190 = vmatpush1.bf16.msra.mxu0 0
    %191 = vmatprep.subr.bf16.mxu0 0
    %192 = vmatpush1.bf16.msra.mxu0 0
    %193 = vmatprep.subr.bf16.mxu0 0
    %194 = vmatpush1.bf16.msra.mxu0 0
    %195 = vmatprep.subr.bf16.mxu0 0
    %196 = vmatpush1.bf16.msra.mxu0 0
    %197 = vmatprep.subr.bf16.mxu0 0
    %198 = vmatpush1.bf16.msra.mxu0 0
    %199 = vmatprep.mubr.bf16.mxu0 0
    %200 = vmatmul.mubr.bf16.gmra.mrb[0].mxu0 %v112
    %v201 = vpop.f32.mrb[0].mxu0
    %v202 = vadd.f32 %v117, %v201
    %v203 = vpop.f32.mrb[0].mxu0
    %v204 = vpop.f32.mrb[0].mxu0
    %v205 = vadd.f32 %v117, %v204
    %v206 = vpop.f32.mrb[0].mxu0
    %207 = vdwg.mxu0
    %208 = vst.msk [vmem:[#allocation2] sm:$0xff] %vm65, %v202
    %209 = vst.msk [vmem:[#allocation2 + $0x8] sm:$0xff] %vm65, %v205
    // Predicated region
    $region22: #{tpu_custom_call.1} parent=1 // pred_check
      _
    $region23: #{tpu_custom_call.1} parent=1 // pred_check_branch
      %211 = sbr.rel (0) target = $region25
    $region24: #{tpu_custom_call.1} parent=1 // pred_region
      %s213 = ssub.s32 256, 256
      %214 = vsyncadd [#allocation3], %s213
      %s215 = sshll.u32 [#allocation2], 4
      %s216 = int_to_ptr.vmem [resolvable:$true] %s215
      %221 = dma.vmem_to_hbm [thread:$0]  %s216, 256, %s5, [#allocation3], 128, 128, 8
    $region25: #{tpu_custom_call.1} parent=1 // pred_fallthru
      _
    // Predicated region
    $region26: #{tpu_custom_call.1} parent=1 // pred_check
      _
    $region27: #{tpu_custom_call.1} parent=1 // pred_check_branch
      %223 = sbr.rel (0) target = $region29
    $region28: #{tpu_custom_call.1} parent=1 // pred_region
      %224 = dma.done [#allocation3], 256
    $region29: #{tpu_custom_call.1} parent=1 // pred_fallthru
      _
    %225 = vsyncpa [#allocation3], 1

</llo_original>
